<compile_context>
chip_gen: v7x
topology: tpu7x:2x2x1
jax: 0.10.0
libtpu: 0.0.40
codegen_flags: <defaults>
</compile_context>

<pallas_src>
import jax
import jax.numpy as jnp
from jax.experimental import pallas as pl
from jax.experimental.pallas import tpu as pltpu


def linear_kernel(x_ref, wb_ref, o_ref):
    # x_ref:  (B, K)    f32   (K = in_features = 3)
    # wb_ref: (K+1, N)  f32   rows 0..K-1 = W^T (pre-transposed), row K = bias
    # o_ref:  (B, N)
    B, K = x_ref.shape
    N = wb_ref.shape[1]

    x = x_ref[...]
    wb = wb_ref[...]

    # Accumulator starts from the bias row (1, N); implicit broadcasting
    # expands it to (B, N) on the first add -- no explicit broadcast_to.
    acc = wb[K:K + 1, :]

    # K is tiny and static: unrolled VPU multiply-adds, no MXU push/pop.
    for k in range(K):
        acc = acc + x[:, k:k + 1] * wb[k:k + 1, :]

    o_ref[...] = acc.astype(o_ref.dtype)


def pack_params(weight, bias):
    """One-time parameter layouting (outside the per-call path).

    weight: (out_features, in_features) -- PyTorch nn.Linear layout
    bias:   (out_features,)
    returns (in_features + 1, out_features): rows 0..K-1 = W^T, row K = bias.
    """
    out_features = weight.shape[0]
    return jnp.concatenate(
        [weight.T, bias.reshape(1, out_features)], axis=0
    )


def testnet_forward(x, wb):
    """Pallas implementation of TestNet.forward (nn.Linear(3, 4)).

    x:  (B, 3)  float32
    wb: (4, 4)  float32  -- packed params from pack_params()
    returns (B, 4) float32
    """
    B, _ = x.shape
    N = wb.shape[1]

    # Gridless call: whole arrays land in VMEM once; full-extent blocks satisfy
    # the (8,128) rule via the equals-full-dims exception.
    return pl.pallas_call(
        linear_kernel,
        out_shape=jax.ShapeDtypeStruct((B, N), x.dtype),
        in_specs=[
            pl.BlockSpec(memory_space=pltpu.MemorySpace.VMEM),
            pl.BlockSpec(memory_space=pltpu.MemorySpace.VMEM),
        ],
        out_specs=pl.BlockSpec(memory_space=pltpu.MemorySpace.VMEM),
    )(x, wb)


if __name__ == "__main__":
    key = jax.random.PRNGKey(0)
    k_x, k_w, k_b = jax.random.split(key, 3)

    B, in_features, out_features = 8, 3, 4

    # Deterministic synthetic parameters (PyTorch-like uniform init bounds),
    # created in the PyTorch (out_features, in_features) layout.
    bound = 1.0 / (in_features ** 0.5)
    weight = jax.random.uniform(
        k_w, (out_features, in_features), jnp.float32, -bound, bound
    )
    bias = jax.random.uniform(
        k_b, (out_features,), jnp.float32, -bound, bound
    )

    # Pack W^T + bias into one buffer ONCE (drops one input DMA per call).
    wb = pack_params(weight, bias)  # (4, 4)

    x = jax.random.normal(k_x, (B, in_features), jnp.float32)

    out = testnet_forward(x, wb)
    out = jax.block_until_ready(out)

    # Sanity check against plain-JAX reference (same semantics as nn.Linear).
    ref = x @ weight.T + bias
    assert out.shape == (B, out_features)
    assert jnp.allclose(out, ref, atol=1e-5, rtol=1e-5)

    print("KERNEL_OK")
</pallas_src>

<mosaic_0001>
module attributes {stable_mosaic.version = 11 : i64} {
  func.func @linear_kernel(%arg0: memref<8x3xf32, #tpu.memory_space<vmem>>, %arg1: memref<4x4xf32, #tpu.memory_space<vmem>>, %arg2: memref<8x4xf32, #tpu.memory_space<vmem>>) attributes {dimension_semantics = [], scalar_prefetch = 0 : i64, scratch_operands = 0 : i64, tpu.core_type = #tpu.core_type<tc>} {
    %c0 = arith.constant 0 : index
    %c0_0 = arith.constant 0 : index
    %0 = vector.load %arg0[%c0, %c0_0] : memref<8x3xf32, #tpu.memory_space<vmem>>, vector<8x3xf32>
    %c0_1 = arith.constant 0 : index
    %c0_2 = arith.constant 0 : index
    %1 = vector.load %arg1[%c0_1, %c0_2] : memref<4x4xf32, #tpu.memory_space<vmem>>, vector<4x4xf32>
    %2 = vector.extract_strided_slice %1 {offsets = [3, 0], sizes = [1, 4], strides = [1, 1]} : vector<4x4xf32> to vector<1x4xf32>
    %3 = vector.extract_strided_slice %0 {offsets = [0, 0], sizes = [8, 1], strides = [1, 1]} : vector<8x3xf32> to vector<8x1xf32>
    %4 = vector.extract_strided_slice %1 {offsets = [0, 0], sizes = [1, 4], strides = [1, 1]} : vector<4x4xf32> to vector<1x4xf32>
    %5 = vector.broadcast %3 : vector<8x1xf32> to vector<8x4xf32>
    %6 = vector.broadcast %4 : vector<1x4xf32> to vector<8x4xf32>
    %7 = arith.mulf %5, %6 : vector<8x4xf32>
    %8 = vector.broadcast %2 : vector<1x4xf32> to vector<8x4xf32>
    %9 = arith.addf %8, %7 : vector<8x4xf32>
    %10 = vector.extract_strided_slice %0 {offsets = [0, 1], sizes = [8, 1], strides = [1, 1]} : vector<8x3xf32> to vector<8x1xf32>
    %11 = vector.extract_strided_slice %1 {offsets = [1, 0], sizes = [1, 4], strides = [1, 1]} : vector<4x4xf32> to vector<1x4xf32>
    %12 = vector.broadcast %10 : vector<8x1xf32> to vector<8x4xf32>
    %13 = vector.broadcast %11 : vector<1x4xf32> to vector<8x4xf32>
    %14 = arith.mulf %12, %13 : vector<8x4xf32>
    %15 = arith.addf %9, %14 : vector<8x4xf32>
    %16 = vector.extract_strided_slice %0 {offsets = [0, 2], sizes = [8, 1], strides = [1, 1]} : vector<8x3xf32> to vector<8x1xf32>
    %17 = vector.extract_strided_slice %1 {offsets = [2, 0], sizes = [1, 4], strides = [1, 1]} : vector<4x4xf32> to vector<1x4xf32>
    %18 = vector.broadcast %16 : vector<8x1xf32> to vector<8x4xf32>
    %19 = vector.broadcast %17 : vector<1x4xf32> to vector<8x4xf32>
    %20 = arith.mulf %18, %19 : vector<8x4xf32>
    %21 = arith.addf %15, %20 : vector<8x4xf32>
    %c0_3 = arith.constant 0 : index
    %c0_4 = arith.constant 0 : index
    %22 = vector.load %arg2[%c0_3, %c0_4] : memref<8x4xf32, #tpu.memory_space<vmem>>, vector<8x4xf32>
    tpu.vector_store %arg2[%c0_3, %c0_4], %21 {strides = array<i32>} : memref<8x4xf32, #tpu.memory_space<vmem>>, vector<8x4xf32>,
    return
  }
}

</mosaic_0001>

<llo_original>
// kernel: tpu_custom_call.1
$region0: #{tpu_custom_call.1}
  #allocation0 [shape = 'u32[]', space=smem, size = 0x4, offset = 0x4, fixed_abs, tag = 'smem constant byte address 0x4 - core index']
  #allocation1 [shape = 'u32[144,128]{1,0:T(1,128)}', space=vmem, size = 0x12000, scoped, tag = 'internal scratch']
  %s0 = inlined_call_operand.vmem [shape: f32[8,3], index: 0, kind: input, shape index: {}]
  %s1 = inlined_call_operand.vmem [shape: f32[4,4], index: 1, kind: input, shape index: {}]
  %s2 = inlined_call_operand.vmem [shape: f32[8,4], index: 2, kind: output, shape index: {}]
  %s3 = sld [smem:[#allocation0]]
  $region18: #{tpu_custom_call.1} parent=0
    _
  %s5 = ssub.s32 1, %s3
  %s6 = scalar_select 0, %s5, %s3
  // Predicated region
  $region2: #{tpu_custom_call.1} parent=0 // pred_check
    _
  $region3: #{tpu_custom_call.1} parent=0 // pred_check_branch
    %8 = sbr.rel (0) target = $region5
  $region4: #{tpu_custom_call.1} parent=0 // pred_region
    _
  $region5: #{tpu_custom_call.1} parent=0 // pred_fallthru
    _
  // Predicated region
  $region6: #{tpu_custom_call.1} parent=0 // pred_check
    _
  $region7: #{tpu_custom_call.1} parent=0 // pred_check_branch
    %10 = sbr.rel (0) target = $region9
  $region8: #{tpu_custom_call.1} parent=0 // pred_region
    _
  $region9: #{tpu_custom_call.1} parent=0 // pred_fallthru
    _
  %v11 = vld [vmem:[%s0] sm:$0xff]
  %v12 = vld [vmem:[%s1] sm:$0xf]
  %14 = vset.pattern.permute.xlu0 0
  %15 = vperm.xlu0 %14, %v11
  %v16 = vpop.permute.xlu0 %15
  %v18 = vlaneseq
  %v19 = vshrl.u32 %v18, 7
  %v20 = vsub.s32 0, %v19
  %v21 = vrot.slane %v12, %v20
  %v22 = vmul.f32 %v16, %v21
  %v23 = vlaneseq
  %v24 = vshrl.u32 %v23, 7
  %v25 = vsub.s32 3, %v24
  %v26 = vrot.slane %v12, %v25
  %v27 = vadd.f32 %v26, %v22
  %28 = vset.pattern.permute.xlu0 1
  %29 = vperm.xlu0 %28, %v11
  %v30 = vpop.permute.xlu0 %29
  %v32 = vlaneseq
  %v33 = vshrl.u32 %v32, 7
  %v34 = vsub.s32 1, %v33
  %v35 = vrot.slane %v12, %v34
  %v36 = vmul.f32 %v30, %v35
  %v37 = vadd.f32 %v27, %v36
  %38 = vset.pattern.permute.xlu0 2
  %39 = vperm.xlu0 %38, %v11
  %v40 = vpop.permute.xlu0 %39
  %v42 = vlaneseq
  %v43 = vshrl.u32 %v42, 7
  %v44 = vsub.s32 2, %v43
  %v45 = vrot.slane %v12, %v44
  %v46 = vmul.f32 %v40, %v45
  %v47 = vadd.f32 %v37, %v46
  %vm48 = vcmask 31744
  %49 = vst.msk [vmem:[%s2] sm:$0xff] %vm48, %v47
  // Predicated region
  $region10: #{tpu_custom_call.1} parent=0 // pred_check
    _
  $region11: #{tpu_custom_call.1} parent=0 // pred_check_branch
    %51 = sbr.rel (0) target = $region13
  $region12: #{tpu_custom_call.1} parent=0 // pred_region
    _
  $region13: #{tpu_custom_call.1} parent=0 // pred_fallthru
    _
  // Predicated region
  $region14: #{tpu_custom_call.1} parent=0 // pred_check
    _
  $region15: #{tpu_custom_call.1} parent=0 // pred_check_branch
    %53 = sbr.rel (0) target = $region17
  $region16: #{tpu_custom_call.1} parent=0 // pred_region
    _
  $region17: #{tpu_custom_call.1} parent=0 // pred_fallthru
    _

</llo_original>
